<compile_context>
chip_gen: v5e
topology: v5e:2x2
jax: 0.10.0
libtpu: 0.0.40
codegen_flags: <defaults>
</compile_context>

<pallas_src>
from functools import partial

import jax
import jax.numpy as jnp
from jax import lax
from jax.experimental import pallas as pl
from jax.experimental.pallas import tpu as pltpu

_MiB = 1024 * 1024


# --------------------------------------------------------------------------
# tiling helpers (generation-aware VMEM budget)
# --------------------------------------------------------------------------
def _vmem_capacity_bytes():
    try:
        info = pltpu.get_tpu_info()
        cap = int(getattr(info, "vmem_capacity_bytes", 0) or 0)
        if cap > 0:
            return cap
    except Exception:
        pass
    # Fallback: infer from device kind (v7x has 64 MiB/TC, older parts 128 MiB).
    try:
        kind = jax.devices()[0].device_kind.lower()
        if "v7" in kind or "7x" in kind:
            return 64 * _MiB
        return 128 * _MiB
    except Exception:
        return 64 * _MiB


def _pick_row_tile(n, per_row_bytes, fixed_bytes, cap_bytes, align, max_tile=4096):
    """Largest row tile (multiple of `align`, capped) fitting ~55% of VMEM."""
    budget = int(cap_bytes * 0.55) - int(fixed_bytes)
    limit = budget // max(int(per_row_bytes), 1)
    tq = min(max_tile, max(align, limit))
    if tq >= n:
        return n  # single full-row tile; a full-dim block is always legal
    return max(align, (tq // align) * align)


def _resolve_row_tile(n, row_tile, auto_tile, align):
    tq = auto_tile if row_tile is None else int(row_tile)
    tq = min(tq, n)
    if tq != n and (tq < align or tq % align != 0):
        raise ValueError(
            f"row_tile={tq} must equal N={n} or be a positive multiple of {align}")
    return tq


def _vmem_limit_bytes(est_bytes, cap_bytes):
    return int(min(int(cap_bytes * 0.75), max(int(est_bytes) + 8 * _MiB, 32 * _MiB)))


# --------------------------------------------------------------------------
# pass 1: projection  y = x @ W'^T + b'   (sqrt(scale) already folded in)
# --------------------------------------------------------------------------
def _proj_kernel(x_ref, w_ref, b_ref, y_ref):
    y_ref[0] = lax.dot_general(
        x_ref[0], w_ref[...],
        dimension_numbers=(((1,), (1,)), ((), ())),
        preferred_element_type=jnp.float32,
    ) + b_ref[...]


def _project(x, w, b, cap, row_tile=None):
    B, N, C = x.shape
    per_row = 2 * 4 * C * 2                      # x + y blocks, double-buffered, f32
    fixed = 2 * 4 * (C * C + C)                  # W + bias, double-buffered
    auto = _pick_row_tile(N, per_row, fixed, cap, align=8)
    tq = _resolve_row_tile(N, row_tile, auto, align=8)
    est = per_row * tq + fixed

    return pl.pallas_call(
        _proj_kernel,
        out_shape=jax.ShapeDtypeStruct((B, N, C), jnp.float32),
        grid=(B, pl.cdiv(N, tq)),
        in_specs=[
            pl.BlockSpec((1, tq, C), lambda bi, q: (bi, q, 0)),
            pl.BlockSpec((C, C), lambda bi, q: (0, 0)),
            pl.BlockSpec((1, C), lambda bi, q: (0, 0)),
        ],
        out_specs=pl.BlockSpec((1, tq, C), lambda bi, q: (bi, q, 0)),
        compiler_params=pltpu.CompilerParams(
            dimension_semantics=("parallel", "parallel"),
            vmem_limit_bytes=_vmem_limit_bytes(est, cap),
        ),
    )(x, w, b)


# --------------------------------------------------------------------------
# pass 2: Gram  self_corr = y_rows @ y_full^T   (scale carried by y)
# --------------------------------------------------------------------------
def _gram_kernel(yr_ref, yf_ref, out_ref):
    out_ref[0] = lax.dot_general(
        yr_ref[0], yf_ref[0],
        dimension_numbers=(((1,), (1,)), ((), ())),
        preferred_element_type=jnp.float32,
    ).astype(out_ref.dtype)


def compute_self_corr(x, weight, bias, *, row_tile=None, out_dtype=jnp.float32):
    """self_corr = ((x @ W^T + b) * C**-0.5) @ (x @ W^T + b)^T."""
    B, N, C = x.shape
    cap = _vmem_capacity_bytes()

    # Fold sqrt(C**-0.5) into weight and bias so the Gram product carries the scale.
    sqrt_scale = jnp.float32(float(C) ** -0.25)
    w = weight.astype(jnp.float32) * sqrt_scale
    b = (bias.astype(jnp.float32) * sqrt_scale).reshape(1, C)

    y = _project(x.astype(jnp.float32), w, b, cap, row_tile=row_tile)

    out_sz = jnp.dtype(out_dtype).itemsize
    align = 8 if out_sz >= 4 else 16
    per_row = 2 * 4 * C + 2 * out_sz * N          # y_rows + out blocks (2-buffered)
    fixed = 2 * 4 * N * C                         # resident y_full (2-buffered)
    auto = _pick_row_tile(N, per_row, fixed, cap, align=align)
    tq = _resolve_row_tile(N, row_tile, auto, align=align)
    est = per_row * tq + fixed

    return pl.pallas_call(
        _gram_kernel,
        out_shape=jax.ShapeDtypeStruct((B, N, N), out_dtype),
        grid=(B, pl.cdiv(N, tq)),
        in_specs=[
            pl.BlockSpec((1, tq, C), lambda bi, q: (bi, q, 0)),   # y row tile
            pl.BlockSpec((1, N, C), lambda bi, q: (bi, 0, 0)),    # y full (resident)
        ],
        out_specs=pl.BlockSpec((1, tq, N), lambda bi, q: (bi, q, 0)),
        compiler_params=pltpu.CompilerParams(
            dimension_semantics=("parallel", "parallel"),
            vmem_limit_bytes=_vmem_limit_bytes(est, cap),
        ),
    )(y, y)


# --------------------------------------------------------------------------
# pass 3: flow_attn[i, j] = softmax(self_corr[j] + confidence(corr_sm[i]))
# grid (N//tq, Bc): i innermost so the self_corr block (all j) stays resident
# and its row max (softmax shift) is computed once per row tile.
# --------------------------------------------------------------------------
def _flow_attn_kernel(sc_ref, corr_ref, fa_ref, mx_ref, *, nbatch):
    i = pl.program_id(1)
    corr = corr_ref[0]                                    # (tq, N)
    neg = corr <= 0.0

    @pl.when(i == 0)
    def _():
        # Row max of self_corr is a valid softmax shift since logits <= self_corr.
        mx_ref[...] = jnp.max(sc_ref[...].astype(jnp.float32), axis=-1, keepdims=True)

    for j in range(nbatch):                               # static, small batch
        sc = sc_ref[j].astype(jnp.float32)                # (tq, N)
        logits = jnp.where(neg, sc - 1.0, sc)             # confidence fused as select
        e = jnp.exp(logits - mx_ref[j])
        denom = jnp.sum(e, axis=-1, keepdims=True)
        fa_ref[0, j] = (e * pl.reciprocal(denom, approx=True)).astype(fa_ref.dtype)


def compute_flow_attn(self_corr, corr_sm, *, row_tile=None, out_dtype=jnp.bfloat16):
    B, N, _ = self_corr.shape
    Bc = corr_sm.shape[0]
    cap = _vmem_capacity_bytes()

    sc_sz = jnp.dtype(self_corr.dtype).itemsize
    cs_sz = jnp.dtype(corr_sm.dtype).itemsize
    out_sz = jnp.dtype(out_dtype).itemsize
    align = 16 if out_sz < 4 else 8               # sublane packing for bf16 stores
    per_row = (2 * B * N * sc_sz                  # self_corr block (resident, 2-buf)
               + 2 * N * cs_sz                    # corr_sm block
               + 2 * B * N * out_sz               # flow_attn block
               + B * 4)                           # row-max scratch
    auto = _pick_row_tile(N, per_row, 0, cap, align=align)
    tq = _resolve_row_tile(N, row_tile, auto, align=align)
    est = per_row * tq

    return pl.pallas_call(
        partial(_flow_attn_kernel, nbatch=B),
        out_shape=jax.ShapeDtypeStruct((Bc, B, N, N), out_dtype),
        grid=(pl.cdiv(N, tq), Bc),
        in_specs=[
            pl.BlockSpec((B, tq, N), lambda q, i: (0, q, 0)),   # self_corr, all j
            pl.BlockSpec((1, tq, N), lambda q, i: (i, q, 0)),   # corr_sm[i]
        ],
        out_specs=pl.BlockSpec((1, B, tq, N), lambda q, i: (i, 0, q, 0)),
        scratch_shapes=[pltpu.VMEM((B, tq, 1), jnp.float32)],
        compiler_params=pltpu.CompilerParams(
            # i is innermost: self_corr block + row-max scratch are reused across it.
            dimension_semantics=("parallel", "arbitrary"),
            vmem_limit_bytes=_vmem_limit_bytes(est, cap),
        ),
    )(self_corr, corr_sm)


# --------------------------------------------------------------------------
# module forward
# --------------------------------------------------------------------------
def cfp_forward(weight, bias, inp=None, corr_sm=None, self_corr=None, thres=0.4,
                row_tile=None, flow_attn_dtype=jnp.bfloat16,
                self_corr_dtype=jnp.float32):
    """Pallas implementation of CFP.forward."""
    del thres  # the reference overrides thres = 0 inside fetch_mask
    if self_corr is None:
        B, C, D, H, W = inp.shape
        x = inp.reshape(B, C, D * H * W).transpose(0, 2, 1)     # (B, N, C)
        self_corr = compute_self_corr(x, weight, bias, row_tile=row_tile,
                                      out_dtype=self_corr_dtype)
    flow_attn = compute_flow_attn(self_corr, corr_sm, row_tile=row_tile,
                                  out_dtype=flow_attn_dtype)
    # conf is a tiny, lane-dense max-reduce; doing it in XLA avoids width-1
    # masked stores inside the flow kernel (perf review).
    corr_mask = jnp.max(corr_sm, axis=-1)
    conf = jnp.where(corr_mask > 0.0, jnp.asarray(1.0, corr_mask.dtype),
                     corr_mask)[..., None]
    return flow_attn, conf, self_corr


def _reference(weight, bias, inp, corr_sm):
    # Pure-JAX reference mirroring the PyTorch semantics (incl. broadcasting).
    B, C, D, H, W = inp.shape
    x = inp.reshape(B, C, D * H * W).transpose(0, 2, 1)
    y = x @ weight.T + bias
    self_corr = (y * jnp.float32(C) ** -0.5) @ jnp.swapaxes(y, 1, 2)   # (B, N, N)
    confidence = jnp.where(corr_sm <= 0.0, -1.0, 0.0)[:, None]         # (B, 1, N, N)
    logits = self_corr + confidence                                    # (B, B, N, N)
    flow_attn = jax.nn.softmax(logits, axis=-1)
    corr_mask = jnp.max(corr_sm, axis=-1)
    conf = jnp.where(corr_mask > 0.0, 1.0, corr_mask)[..., None]
    return flow_attn, conf, self_corr


if __name__ == "__main__":
    def run_case(B, C, D, H, W, row_tile, flow_dtype):
        N = D * H * W
        key = jax.random.PRNGKey(0)
        k_w, k_b, k_x, k_c = jax.random.split(key, 4)
        weight = jax.random.normal(k_w, (C, C), jnp.float32) / jnp.sqrt(jnp.float32(C))
        bias = jax.random.normal(k_b, (C,), jnp.float32) * 0.1
        inp = jax.random.normal(k_x, (B, C, D, H, W), jnp.float32)
        corr_sm = jax.random.normal(k_c, (B, N, N), jnp.float32)

        fa_ref, conf_ref, sc_ref = _reference(weight, bias, inp, corr_sm)
        fa, conf, sc = cfp_forward(weight, bias, inp=inp, corr_sm=corr_sm,
                                   row_tile=row_tile, flow_attn_dtype=flow_dtype)
        jax.block_until_ready((fa, conf, sc))

        assert fa.shape == (B, B, N, N) and fa.dtype == jnp.dtype(flow_dtype)
        assert conf.shape == (B, N, 1)
        assert sc.shape == (B, N, N)
        tol = 2e-2 if jnp.dtype(flow_dtype) == jnp.bfloat16 else 2e-3
        assert jnp.allclose(sc, sc_ref, atol=1e-3, rtol=1e-3)
        assert jnp.allclose(fa.astype(jnp.float32), fa_ref, atol=tol, rtol=tol)
        assert jnp.allclose(conf, conf_ref, atol=1e-6, rtol=1e-6)

    run_case(2, 16, 2, 4, 4, None, jnp.bfloat16)   # single full-row tile, bf16 output
    run_case(2, 16, 2, 4, 4, 16, jnp.bfloat16)     # explicit row tiling (even split)
    run_case(2, 16, 2, 4, 5, 16, jnp.float32)      # N=40: cdiv grid with partial tail

    print("KERNEL_OK")
</pallas_src>

<mosaic_0001>
module attributes {stable_mosaic.version = 11 : i64} {
  func.func @_proj_kernel(%arg0: i32, %arg1: i32, %arg2: memref<1x32x16xf32, #tpu.memory_space<vmem>>, %arg3: memref<16x16xf32, #tpu.memory_space<vmem>>, %arg4: memref<1x16xf32, #tpu.memory_space<vmem>>, %arg5: memref<1x32x16xf32, #tpu.memory_space<vmem>>) attributes {dimension_semantics = [#tpu.dimension_semantics<parallel>, #tpu.dimension_semantics<parallel>], iteration_bounds = array<i64: 2, 1>, scalar_prefetch = 0 : i64, scratch_operands = 0 : i64, tpu.core_type = #tpu.core_type<tc>, window_params = [{transform_indices = @transform_0, window_bounds = array<i64: 1, 32, 16>}, {pipeline_mode = #tpu.pipeline_mode<synchronous>, transform_indices = @transform_1, window_bounds = array<i64: 16, 16>}, {pipeline_mode = #tpu.pipeline_mode<synchronous>, transform_indices = @transform_2, window_bounds = array<i64: 1, 16>}, {transform_indices = @transform_3, window_bounds = array<i64: 1, 32, 16>}]} {
    %c0 = arith.constant 0 : index
    %c0_0 = arith.constant 0 : index
    %c0_1 = arith.constant 0 : index
    %0 = vector.load %arg2[%c0, %c0_0, %c0_1] : memref<1x32x16xf32, #tpu.memory_space<vmem>>, vector<1x32x16xf32>
    %1 = vector.shape_cast %0 : vector<1x32x16xf32> to vector<32x16xf32>
    %c0_2 = arith.constant 0 : index
    %c0_3 = arith.constant 0 : index
    %2 = vector.load %arg3[%c0_2, %c0_3] : memref<16x16xf32, #tpu.memory_space<vmem>>, vector<16x16xf32>
    %cst = arith.constant dense<0.000000e+00> : vector<32x16xf32>
    %3 = tpu.matmul %1, %2, %cst {dimension_numbers = #tpu.dot_dimension_numbers<[1], [1], [0], [0], [0, 0, 1, 0], [], []>} : vector<32x16xf32>, vector<16x16xf32>, vector<32x16xf32> -> vector<32x16xf32>
    %c0_4 = arith.constant 0 : index
    %c0_5 = arith.constant 0 : index
    %4 = vector.load %arg4[%c0_4, %c0_5] : memref<1x16xf32, #tpu.memory_space<vmem>>, vector<1x16xf32>
    %5 = vector.broadcast %4 : vector<1x16xf32> to vector<32x16xf32>
    %6 = arith.addf %3, %5 : vector<32x16xf32>
    %c0_6 = arith.constant 0 : index
    %c0_7 = arith.constant 0 : index
    %c0_8 = arith.constant 0 : index
    %7 = vector.load %arg5[%c0_6, %c0_7, %c0_8] : memref<1x32x16xf32, #tpu.memory_space<vmem>>, vector<1x32x16xf32>
    %8 = vector.shape_cast %7 : vector<1x32x16xf32> to vector<32x16xf32>
    %9 = vector.shape_cast %6 : vector<32x16xf32> to vector<1x32x16xf32>
    tpu.vector_store %arg5[%c0_6, %c0_7, %c0_8], %9 {strides = array<i32>} : memref<1x32x16xf32, #tpu.memory_space<vmem>>, vector<1x32x16xf32>,
    return
  }
  func.func @transform_0(%arg0: i32, %arg1: i32) -> (i32, i32, i32) {
    %c0_i32 = arith.constant 0 : i32
    %c0_i32_0 = arith.constant 0 : i32
    return %arg0, %arg1, %c0_i32 : i32, i32, i32
  }
  func.func @transform_1(%arg0: i32, %arg1: i32) -> (i32, i32) {
    %c0_i32 = arith.constant 0 : i32
    %c0_i32_0 = arith.constant 0 : i32
    %c0_i32_1 = arith.constant 0 : i32
    return %c0_i32, %c0_i32_0 : i32, i32
  }
  func.func @transform_2(%arg0: i32, %arg1: i32) -> (i32, i32) {
    %c0_i32 = arith.constant 0 : i32
    %c0_i32_0 = arith.constant 0 : i32
    %c0_i32_1 = arith.constant 0 : i32
    return %c0_i32, %c0_i32_0 : i32, i32
  }
  func.func @transform_3(%arg0: i32, %arg1: i32) -> (i32, i32, i32) {
    %c0_i32 = arith.constant 0 : i32
    %c0_i32_0 = arith.constant 0 : i32
    return %arg0, %arg1, %c0_i32 : i32, i32, i32
  }
}

</mosaic_0001>

<llo_original>
// kernel: tpu_custom_call.1
$region0: #{tpu_custom_call.1}
  #allocation0 [shape = 'u32[]', space=smem, size = 0x4, offset = 0x4, fixed_abs, tag = 'smem constant byte address 0x4 - core index']
  #allocation1 [shape = 'u32[72,128]{1,0:T(1,128)}', space=vmem, size = 0x9000, scoped, tag = 'internal scratch']
  %s0 = inlined_call_operand.vmem [shape: f32[2,32,16], index: 0, kind: input, shape index: {}]
  %s1 = inlined_call_operand.vmem [shape: f32[16,16], index: 1, kind: input, shape index: {}]
  %s2 = inlined_call_operand.vmem [shape: f32[1,16], index: 2, kind: input, shape index: {}]
  %s3 = inlined_call_operand.vmem [shape: f32[2,32,16], index: 3, kind: output, shape index: {}]
  %s4 = sld [smem:[#allocation0]]
  $region45: #{tpu_custom_call.1} parent=0
    _
  %s6 = ssub.s32 1, %s4
  %s7 = scalar_select 0, %s6, %s4
  loop: start=0, step=1, limit=4
  $region2: #{tpu_custom_call.1} parent=0 // loop_pre_header
    _
  $region3: #{tpu_custom_call.1} parent=0 // loop_header
    %s9 = sphi 0, %s13
    %p10 = scmp.ge.s32.totalorder %s9, 4
    %s16 = sphi 0, %s28
    %s17 = sphi 0, %s24
    %s18 = sphi 0, %s16
    %s19 = sphi 0, %s17
    %s20 = sphi 0, %s18
    %s21 = sphi 0, %s19
    %s33 = sphi 0, %s35
    %s36 = sphi 0, %s33
    %s37 = sphi 0, %s36
    %s53 = sphi 0, %s37
    %s57 = sphi 0, %s57
    %s59 = sphi 0, %s57
    %s60 = sphi 0, %s59
    %s74 = sphi 0, %s60
    %s78 = sphi 0, %s78
    %s80 = sphi 0, %s78
    %s81 = sphi 0, %s80
    %s95 = sphi 0, %s81
    %s103 = sphi 0, %s105
    %s106 = sphi 0, %s103
    %s107 = sphi 0, %s106
    %s123 = sphi 0, %s107
  $region4: #{tpu_custom_call.1} parent=0 // loop_header_branch
    %12 = sbr.rel (%p10) target = $region8
  $region5: #{tpu_custom_call.1} parent=0 // loop_body
    %s14 = ssub.s32 %s9, 1
    %s15 = ssub.s32 %s9, 2
    %s22 = sadd.s32 1, %s17
    %p23 = scmp.ge.s32.totalorder %s22, 1
    %s24 = scalar_select %p23, 0, %s22
    %s25 = sadd.s32 1, %s16
    %s26 = scalar_select %p23, %s25, %s16
    %p27 = scmp.ge.s32.totalorder %s26, 2
    %s28 = scalar_select %p27, 0, %s26
    %s29 = ssub.s32 %s16, %s28
    %s30 = ssub.s32 %s17, %s24
    %s31 = sor.u32 %s29, %s30
    %p32 = scmp.eq.s32.totalorder %s31, 0
    %s34 = sadd.s32 %s33, 1
    %s35 = scalar_select %p32, %s33, %s34
    %p38 = pneg %p32
    %p39 = scmp.eq.s32.totalorder %s9, 1
    %p40 = por %p38, %p39
    %p41 = scmp.ne.s32.totalorder %s33, %s36
    %p42 = scmp.eq.s32.totalorder %s9, 0
    %p43 = por %p41, %p42
    %p44 = scmp.ne.s32.totalorder %s33, %s36
    %p45 = scmp.eq.s32.totalorder %s14, 1
    %p46 = por %p44, %p45
    %p47 = scmp.ne.s32.totalorder %s36, %s37
    %p48 = scmp.eq.s32.totalorder %s14, 0
    %p49 = por %p47, %p48
    %p50 = scmp.ne.s32.totalorder %s36, %s37
    %p51 = scmp.eq.s32.totalorder %s15, 1
    %p52 = por %p50, %p51
    %p54 = scmp.ne.s32.totalorder %s37, %s53
    %p55 = scmp.eq.s32.totalorder %s15, 0
    %p56 = por %p54, %p55
    %s58 = sadd.s32 %s57, 1
    %p61 = scmp.eq.s32.totalorder %s9, 1
    %p62 = scmp.ne.s32.totalorder %s57, %s59
    %p63 = scmp.eq.s32.totalorder %s9, 0
    %p64 = por %p62, %p63
    %p65 = scmp.ne.s32.totalorder %s57, %s59
    %p66 = scmp.eq.s32.totalorder %s14, 1
    %p67 = por %p65, %p66
    %p68 = scmp.ne.s32.totalorder %s59, %s60
    %p69 = scmp.eq.s32.totalorder %s14, 0
    %p70 = por %p68, %p69
    %p71 = scmp.ne.s32.totalorder %s59, %s60
    %p72 = scmp.eq.s32.totalorder %s15, 1
    %p73 = por %p71, %p72
    %p75 = scmp.ne.s32.totalorder %s60, %s74
    %p76 = scmp.eq.s32.totalorder %s15, 0
    %p77 = por %p75, %p76
    %s79 = sadd.s32 %s78, 1
    %p82 = scmp.eq.s32.totalorder %s9, 1
    %p83 = scmp.ne.s32.totalorder %s78, %s80
    %p84 = scmp.eq.s32.totalorder %s9, 0
    %p85 = por %p83, %p84
    %p86 = scmp.ne.s32.totalorder %s78, %s80
    %p87 = scmp.eq.s32.totalorder %s14, 1
    %p88 = por %p86, %p87
    %p89 = scmp.ne.s32.totalorder %s80, %s81
    %p90 = scmp.eq.s32.totalorder %s14, 0
    %p91 = por %p89, %p90
    %p92 = scmp.ne.s32.totalorder %s80, %s81
    %p93 = scmp.eq.s32.totalorder %s15, 1
    %p94 = por %p92, %p93
    %p96 = scmp.ne.s32.totalorder %s81, %s95
    %p97 = scmp.eq.s32.totalorder %s15, 0
    %p98 = por %p96, %p97
    %s99 = ssub.s32 %s16, %s28
    %s100 = ssub.s32 %s17, %s24
    %s101 = sor.u32 %s99, %s100
    %p102 = scmp.eq.s32.totalorder %s101, 0
    %s104 = sadd.s32 %s103, 1
    %s105 = scalar_select %p102, %s103, %s104
    %p108 = pneg %p102
    %p109 = scmp.eq.s32.totalorder %s9, 1
    %p110 = por %p108, %p109
    %p111 = scmp.ne.s32.totalorder %s103, %s106
    %p112 = scmp.eq.s32.totalorder %s9, 0
    %p113 = por %p111, %p112
    %p114 = scmp.ne.s32.totalorder %s103, %s106
    %p115 = scmp.eq.s32.totalorder %s14, 1
    %p116 = por %p114, %p115
    %p117 = scmp.ne.s32.totalorder %s106, %s107
    %p118 = scmp.eq.s32.totalorder %s14, 0
    %p119 = por %p117, %p118
    %p120 = scmp.ne.s32.totalorder %s106, %s107
    %p121 = scmp.eq.s32.totalorder %s15, 1
    %p122 = por %p120, %p121
    %p124 = scmp.ne.s32.totalorder %s107, %s123
    %p125 = scmp.eq.s32.totalorder %s15, 0
    %p126 = por %p124, %p125
    %p127 = scmp.le.s32.totalorder 1, %s9
    %p128 = scmp.lt.s32.totalorder %s9, 3
    %p129 = pnand %p127, %p128
    %p130 = pneg %p129
    // Predicated region
    $region9: #{tpu_custom_call.1} parent=5 // pred_check
      _
    $region10: #{tpu_custom_call.1} parent=5 // pred_check_branch
      %132 = sbr.rel (%p129) target = $region12
    $region11: #{tpu_custom_call.1} parent=5 // pred_region
      %s133 = ssub.s32 %s9, 1
      // Predicated region
      $region13: #{tpu_custom_call.1} parent=11 // pred_check
        %p134 = pneg %p70
      $region14: #{tpu_custom_call.1} parent=11 // pred_check_branch
        %136 = sbr.rel (%p134) target = $region16
      $region15: #{tpu_custom_call.1} parent=11 // pred_region
        _
      $region16: #{tpu_custom_call.1} parent=11 // pred_fallthru
        _
      // Predicated region
      $region17: #{tpu_custom_call.1} parent=11 // pred_check
        %p137 = pneg %p91
      $region18: #{tpu_custom_call.1} parent=11 // pred_check_branch
        %139 = sbr.rel (%p137) target = $region20
      $region19: #{tpu_custom_call.1} parent=11 // pred_region
        _
      $region20: #{tpu_custom_call.1} parent=11 // pred_fallthru
        _
    $region12: #{tpu_custom_call.1} parent=5 // pred_fallthru
      _
    %p140 = scmp.lt.s32.totalorder %s9, 2
    // Predicated region
    $region21: #{tpu_custom_call.1} parent=5 // pred_check
      %p141 = pneg %p140
    $region22: #{tpu_custom_call.1} parent=5 // pred_check_branch
      %143 = sbr.rel (%p141) target = $region24
    $region23: #{tpu_custom_call.1} parent=5 // pred_region
      // Predicated region
      $region25: #{tpu_custom_call.1} parent=23 // pred_check
        %p144 = pneg %p43
      $region26: #{tpu_custom_call.1} parent=23 // pred_check_branch
        %146 = sbr.rel (%p144) target = $region28
      $region27: #{tpu_custom_call.1} parent=23 // pred_region
        %s147 = smul.u32 4, %s17
        %p148 = scmp.lt.s32.totalorder %s16, 1
        %s149 = scalar_select %p148, %s16, 1
        %p150 = scmp.lt.s32.totalorder %s147, 3
        %s151 = scalar_select %p150, %s147, 3
        %s152 = smul.addr %s149, 4
        %s153 = sadd.s32 %s151, %s152
        %s154 = smul.addr %s153, 8
        %s155 = scalar_lea.vmem %s0, %s154
        %s156 = smul.u32 4, %s17
      $region28: #{tpu_custom_call.1} parent=23 // pred_fallthru
        _
    $region24: #{tpu_custom_call.1} parent=5 // pred_fallthru
      _
    %p157 = scmp.le.s32.totalorder 1, %s9
    %p158 = scmp.lt.s32.totalorder %s9, 3
    %p159 = pnand %p157, %p158
    %p160 = pneg %p159
    // Predicated region
    $region29: #{tpu_custom_call.1} parent=5 // pred_check
      _
    $region30: #{tpu_custom_call.1} parent=5 // pred_check_branch
      %162 = sbr.rel (%p159) target = $region32
    $region31: #{tpu_custom_call.1} parent=5 // pred_region
      %s163 = ssub.s32 %s9, 1
      %s164 = smul.u32 4, %s19
      %p165 = scmp.lt.s32.totalorder %s18, 1
      %s166 = scalar_select %p165, %s18, 1
      %p167 = scmp.lt.s32.totalorder %s164, 3
      %s168 = scalar_select %p167, %s164, 3
      %s169 = smul.addr %s166, 4
      %s170 = sadd.s32 %s168, %s169
      %s171 = smul.addr %s170, 8
      %s172 = scalar_lea.vmem %s0, %s171
      %p173 = pneg %p49
      %p174 = pneg %p46
      %p175 = pneg %p70
      %p176 = pneg %p67
      %p177 = pneg %p91
      %p178 = pneg %p88
      %p179 = pneg %p119
      %p180 = pneg %p116
      %s181 = smul.u32 4, %s19
      %p182 = scmp.lt.s32.totalorder %s18, 1
      %s183 = scalar_select %p182, %s18, 1
      %p184 = scmp.lt.s32.totalorder %s181, 3
      %s185 = scalar_select %p184, %s181, 3
      %s186 = smul.addr %s183, 4
      %s187 = sadd.s32 %s185, %s186
      %s188 = smul.addr %s187, 8
      %s189 = scalar_lea.vmem %s3, %s188
      %s190 = smul.u32 4, %s19
      %p191 = scmp.lt.s32.totalorder %s18, 1
      %s192 = scalar_select %p191, %s18, 1
      %p193 = scmp.lt.s32.totalorder %s190, 3
      %s194 = scalar_select %p193, %s190, 3
      %s195 = smul.addr %s192, 4
      %s196 = sadd.s32 %s194, %s195
      %s197 = smul.addr %s196, 8
      %s198 = scalar_lea.vmem %s0, %s197
      %s199 = smul.u32 4, %s19
      %s200 = smul.u32 4, %s19
      %p201 = scmp.lt.s32.totalorder %s18, 1
      %s202 = scalar_select %p201, %s18, 1
      %p203 = scmp.lt.s32.totalorder %s200, 3
      %s204 = scalar_select %p203, %s200, 3
      %s205 = smul.addr %s202, 4
      %s206 = sadd.s32 %s204, %s205
      %s207 = smul.addr %s206, 8
      %s208 = scalar_lea.vmem %s3, %s207
      %s209 = smul.u32 4, %s19
      %v210 = vld [vmem:[%s198] sm:$0xff]
      %v211 = vld [vmem:[%s198 + $0x8] sm:$0xff]
      %v212 = vld [vmem:[%s198 + $0x10] sm:$0xff]
      %v213 = vld [vmem:[%s198 + $0x18] sm:$0xff]
      %v214 = vld [vmem:[%s1] sm:$0xff]
      %v215 = vld [vmem:[%s1 + $0x8] sm:$0xff]
      %v216 = vld [vmem:[%s2] sm:$0x1]
      %v218 = vperm.slane %v216, 0
      %vm220 = vcmask 130048
      %v222 = vsel %vm220, %v210, 0
      %v225 = vsel %vm220, %v211, 0
      %v228 = vsel %vm220, %v212, 0
      %v231 = vsel %vm220, %v213, 0
      %v234 = vsel %vm220, %v214, 0
      %v237 = vsel %vm220, %v215, 0
      %239 = vmatpush.xpose.msra.mxu0 0.0
      %240 = vmatpush.xpose.msra.mxu0 0.0
      %241 = vmatpush.xpose.msra.mxu0 0.0
      %242 = vmatpush.xpose.msra.mxu0 0.0
      %243 = vmatpush.xpose.msra.mxu0 0.0
      %244 = vmatpush.xpose.msra.mxu0 0.0
      %245 = vmatpush.xpose.msra.mxu0 0.0
      %246 = vmatpush.xpose.msra.mxu0 0.0
      %247 = vmatpush.xpose.msra.mxu0 0.0
      %248 = vmatpush.xpose.msra.mxu0 0.0
      %249 = vmatpush.xpose.msra.mxu0 0.0
      %250 = vmatpush.xpose.msra.mxu0 0.0
      %251 = vmatpush.xpose.msra.mxu0 0.0
      %252 = vmatpush.xpose.msra.mxu0 0.0
      %253 = vmatpush.xpose.msra.mxu0 %v237
      %254 = vmatpush.xpose.msra.mxu0 %v234
      %255 = vmatmul.f32.gmra.mxu0 %v222
      %v256 = vpop.f32.mrf.mxu0
      %v257 = vadd.f32 %v218, %v256
      %258 = vmatmul.f32.gmra.mxu0 %v225
      %v259 = vpop.f32.mrf.mxu0
      %v260 = vadd.f32 %v218, %v259
      %261 = vmatmul.f32.gmra.mxu0 %v228
      %v262 = vpop.f32.mrf.mxu0
      %v263 = vadd.f32 %v218, %v262
      %264 = vmatmul.f32.gmra.mxu0 %v231
      %v265 = vpop.f32.mrf.mxu0
      %v266 = vadd.f32 %v218, %v265
      %267 = vdwg.mxu0
      %268 = vst.msk [vmem:[%s208] sm:$0xff] %vm220, %v257
      %269 = vst.msk [vmem:[%s208 + $0x8] sm:$0xff] %vm220, %v260
      %270 = vst.msk [vmem:[%s208 + $0x10] sm:$0xff] %vm220, %v263
      %271 = vst.msk [vmem:[%s208 + $0x18] sm:$0xff] %vm220, %v266
      %s272 = smul.u32 4, %s19
      %p273 = scmp.lt.s32.totalorder %s18, 1
      %s274 = scalar_select %p273, %s18, 1
      %p275 = scmp.lt.s32.totalorder %s272, 3
      %s276 = scalar_select %p275, %s272, 3
      %s277 = smul.addr %s274, 4
      %s278 = sadd.s32 %s276, %s277
      %s279 = smul.addr %s278, 8
      %s280 = scalar_lea.vmem %s3, %s279
      // Predicated region
      $region33: #{tpu_custom_call.1} parent=31 // pred_check
        %p281 = pneg %p116
      $region34: #{tpu_custom_call.1} parent=31 // pred_check_branch
        %283 = sbr.rel (%p281) target = $region36
      $region35: #{tpu_custom_call.1} parent=31 // pred_region
        %s284 = smul.u32 4, %s19
      $region36: #{tpu_custom_call.1} parent=31 // pred_fallthru
        _
    $region32: #{tpu_custom_call.1} parent=5 // pred_fallthru
      _
    %p285 = scmp.le.s32.totalorder 2, %s9
    // Predicated region
    $region37: #{tpu_custom_call.1} parent=5 // pred_check
      %p286 = pneg %p285
    $region38: #{tpu_custom_call.1} parent=5 // pred_check_branch
      %288 = sbr.rel (%p286) target = $region40
    $region39: #{tpu_custom_call.1} parent=5 // pred_region
      %s289 = ssub.s32 %s9, 2
      // Predicated region
      $region41: #{tpu_custom_call.1} parent=39 // pred_check
        %p290 = pneg %p122
      $region42: #{tpu_custom_call.1} parent=39 // pred_check_branch
        %292 = sbr.rel (%p290) target = $region44
      $region43: #{tpu_custom_call.1} parent=39 // pred_region
        %s293 = smul.u32 4, %s21
        %p294 = scmp.lt.s32.totalorder %s20, 1
        %s295 = scalar_select %p294, %s20, 1
        %p296 = scmp.lt.s32.totalorder %s293, 3
        %s297 = scalar_select %p296, %s293, 3
        %s298 = smul.addr %s295, 4
        %s299 = sadd.s32 %s297, %s298
        %s300 = smul.addr %s299, 8
        %s301 = scalar_lea.vmem %s3, %s300
      $region44: #{tpu_custom_call.1} parent=39 // pred_fallthru
        _
    $region40: #{tpu_custom_call.1} parent=5 // pred_fallthru
      _
  $region6: #{tpu_custom_call.1} parent=0 // loop_footer
    %s13 = sadd.s32 1, %s9
  $region7: #{tpu_custom_call.1} parent=0 // loop_footer_branch
    %8 = sbr.rel target = $region3
  $region8: #{tpu_custom_call.1} parent=0 // loop_exit
    _

</llo_original>
